<compile_context>
chip_gen: v7x
topology: tpu7x:2x2x1
jax: 0.10.0
libtpu: 0.0.40
codegen_flags: <defaults>
</compile_context>

<pallas_src>
import functools

import jax
import jax.numpy as jnp
import numpy as np
from jax.experimental import pallas as pl
from jax.experimental.pallas import tpu as pltpu

GAMMA = 2.0            # smp FocalLoss default (hard-coded as q*q below)
FOCAL_NORM_EPS = 1e-6  # clamp_min on focal_term.sum()
JACCARD_EPS = 1e-7     # clamp_min on union (smooth = 0.0)


def _loss_sums_kernel(x_ref, t_ref, out_ref):
    """Per-class partial sums over one (batch, split) pixel range.

    out block (1, 1, 5, C) rows:
      0: sum(focal_term * bce)   focal numerator
      1: sum(focal_term)         focal normalizer
      2: sum(p * onehot)         jaccard intersection
      3: sum(p)                  jaccard pred cardinality
      4: sum(onehot)             jaccard target cardinality / non-empty mask
    """
    i = pl.program_id(2)

    @pl.when(i == 0)
    def _():
        out_ref[...] = jnp.zeros_like(out_ref)

    x = x_ref[0].astype(jnp.float32)          # (C, T) logits, classes on sublanes
    t = t_ref[0]                              # (1, T) int32 labels (-1 == padding)
    valid = (t >= 0).astype(jnp.float32)      # (1, T)

    cls_ids = jax.lax.broadcasted_iota(jnp.int32, x.shape, 0)
    onehot = (cls_ids == t).astype(jnp.float32)             # padded pixel -> all-zero column

    # --- Jaccard path: softmax probabilities over classes (sublane axis) ---
    # One exact divide per pixel row (not per class*pixel); padding mask folded into it.
    m = jnp.max(x, axis=0, keepdims=True)
    ex = jnp.exp(x - m)
    inv = valid / jnp.sum(ex, axis=0, keepdims=True)        # (1, T)
    p = ex * inv                                            # padded pixels already zeroed

    # --- Focal path: per-class BCE-with-logits on one-hot target (stable form) ---
    # bce = max(x,0) - x*t + log(1 + exp(-|x|))
    bce = jnp.maximum(x, 0.0) - x * onehot + jnp.log1p(jnp.exp(-jnp.abs(x)))
    q = 1.0 - jnp.exp(-bce)                                 # 1 - pt
    focal_term = (q * q) * valid                            # gamma == 2 -> plain square
    fl = focal_term * bce

    sums = jnp.stack(
        [
            jnp.sum(fl, axis=1),
            jnp.sum(focal_term, axis=1),
            jnp.sum(p * onehot, axis=1),
            jnp.sum(p, axis=1),
            jnp.sum(onehot, axis=1),
        ],
        axis=0,
    )                                                       # (5, C)
    out_ref[...] += sums[None, None, :, :]


@functools.partial(jax.jit, static_argnames=("max_tile_pix",))
def focal_jaccard_loss(preds, targets, *, max_tile_pix=8192):
    """preds: (B, C, H, W) float logits; targets: (B, H, W) int class ids. Returns scalar."""
    B, C, H, W = preds.shape
    hw = H * W
    n_pix = B * hw

    x = preds.reshape(B, C, hw)                       # free view of native NCHW layout
    t = targets.reshape(B, 1, hw).astype(jnp.int32)   # no-op cast if already int32

    nsplit = 2   # 2-way 'parallel' split of the pixel range (uses both v7x TensorCores)

    # Pixel-tile size: as large as possible, but keep ~6 live f32 (C, tile) intermediates
    # under ~8 MiB so the kernel fits default scoped VMEM on v5e/v6e/v7x even for large C.
    budget_tile = max(128, (8 * 1024 * 1024) // (6 * 4 * C))
    per_split = pl.cdiv(hw, nsplit)
    tile_pix = min(max_tile_pix, budget_tile, pl.cdiv(per_split, 128) * 128)
    tile_pix = max(128, (tile_pix // 128) * 128)
    tiles_per_split = pl.cdiv(hw, nsplit * tile_pix)
    hw_pad = nsplit * tiles_per_split * tile_pix

    if hw_pad != hw:
        x = jnp.pad(x, ((0, 0), (0, 0), (0, hw_pad - hw)))
        t = jnp.pad(t, ((0, 0), (0, 0), (0, hw_pad - hw)), constant_values=-1)

    def pix_map(b, s, i):
        return (b, 0, s * tiles_per_split + i)

    cost = pl.CostEstimate(
        flops=n_pix * C * 30,
        transcendentals=n_pix * C * 4,
        bytes_accessed=int(x.size) * x.dtype.itemsize
        + int(t.size) * 4
        + B * nsplit * 5 * C * 4,
    )

    partials = pl.pallas_call(
        _loss_sums_kernel,
        out_shape=jax.ShapeDtypeStruct((B, nsplit, 5, C), jnp.float32),
        grid_spec=pltpu.PrefetchScalarGridSpec(
            num_scalar_prefetch=0,
            grid=(B, nsplit, tiles_per_split),
            in_specs=[
                pl.BlockSpec((1, C, tile_pix), pix_map),   # logits: classes x pixels (lane-dense)
                pl.BlockSpec((1, 1, tile_pix), pix_map),   # labels: lane-dense row
            ],
            out_specs=pl.BlockSpec((1, 1, 5, C), lambda b, s, i: (b, s, 0, 0)),
        ),
        compiler_params=pltpu.CompilerParams(
            dimension_semantics=("parallel", "parallel", "arbitrary"),
            vmem_limit_bytes=32 * 1024 * 1024,
        ),
        cost_estimate=cost,
    )(x, t)

    sums = jnp.sum(partials, axis=(0, 1))                  # (5, C)
    fl_sum, ft_sum, inter, p_sum, oh_sum = sums[0], sums[1], sums[2], sums[3], sums[4]

    # Focal (normalized=True, reduction='mean', summed over classes):
    #   per class: sum(ft*bce) / (clamp_min(sum(ft), 1e-6) * N_pix)
    focal = jnp.sum(fl_sum / (jnp.maximum(ft_sum, FOCAL_NORM_EPS) * n_pix))

    # Jaccard: IoU per class over (batch, pixels); empty classes masked out; mean over classes.
    union = (p_sum + oh_sum) - inter
    score = inter / jnp.maximum(union, JACCARD_EPS)
    jloss = (1.0 - score) * (oh_sum > 0).astype(jnp.float32)
    jaccard = jnp.mean(jloss)

    return focal + jaccard


def _reference_loss(preds, targets):
    """Pure-JAX reference mirroring smp's FocalLoss + JaccardLoss (multiclass)."""
    B, C, H, W = preds.shape
    x = preds.astype(jnp.float32)
    onehot = jax.nn.one_hot(targets, C, dtype=jnp.float32)          # (B,H,W,C)
    onehot = jnp.transpose(onehot, (0, 3, 1, 2))                    # (B,C,H,W)

    bce = jnp.maximum(x, 0.0) - x * onehot + jnp.log1p(jnp.exp(-jnp.abs(x)))
    pt = jnp.exp(-bce)
    ft = (1.0 - pt) ** GAMMA
    fl = ft * bce
    focal = 0.0
    for c in range(C):
        norm = jnp.maximum(jnp.sum(ft[:, c]), FOCAL_NORM_EPS)
        focal = focal + jnp.mean(fl[:, c] / norm)

    p = jax.nn.softmax(x, axis=1)
    dims = (0, 2, 3)
    inter = jnp.sum(p * onehot, axis=dims)
    union = jnp.sum(p + onehot, axis=dims) - inter
    score = inter / jnp.maximum(union, JACCARD_EPS)
    jloss = (1.0 - score) * (jnp.sum(onehot, axis=dims) > 0).astype(jnp.float32)
    return focal + jnp.mean(jloss)


if __name__ == "__main__":
    num_classes = 4
    B, H, W = 2, 16, 16

    key = jax.random.PRNGKey(0)
    k1, k2 = jax.random.split(key)
    preds = jax.random.normal(k1, (B, num_classes, H, W), dtype=jnp.float32)
    targets = jax.random.randint(k2, (B, H, W), 0, num_classes, dtype=jnp.int32)

    loss = jax.block_until_ready(focal_jaccard_loss(preds, targets))
    ref = jax.block_until_ready(_reference_loss(preds, targets))
    np.testing.assert_allclose(np.asarray(loss), np.asarray(ref), rtol=1e-4, atol=1e-4)

    print("KERNEL_OK")
</pallas_src>

<mosaic_0001>
module attributes {stable_mosaic.version = 11 : i64} {
  func.func @_loss_sums_kernel(%arg0: i32, %arg1: i32, %arg2: i32, %arg3: memref<1x4x128xf32, #tpu.memory_space<vmem>>, %arg4: memref<1x1x128xi32, #tpu.memory_space<vmem>>, %arg5: memref<1x1x5x4xf32, #tpu.memory_space<vmem>>) attributes {dimension_semantics = [#tpu.dimension_semantics<parallel>, #tpu.dimension_semantics<parallel>, #tpu.dimension_semantics<arbitrary>], iteration_bounds = array<i64: 2, 2, 1>, scalar_prefetch = 0 : i64, scratch_operands = 0 : i64, tpu.core_type = #tpu.core_type<tc>, window_params = [{transform_indices = @transform_0, window_bounds = array<i64: 1, 4, 128>}, {transform_indices = @transform_1, window_bounds = array<i64: 1, 1, 128>}, {transform_indices = @transform_2, window_bounds = array<i64: 1, 1, 5, 4>}]} {
    %c0_i32 = arith.constant 0 : i32
    %0 = arith.cmpi eq, %arg2, %c0_i32 : i32
    %1 = arith.extui %0 : i1 to i32
    %c0_i32_0 = arith.constant 0 : i32
    %2 = arith.cmpi ne, %1, %c0_i32_0 : i32
    scf.if %2 {
      %cst_25 = arith.constant 0.000000e+00 : f32
      %61 = vector.broadcast %cst_25 : f32 to vector<1x1x5x4xf32>
      %c0_26 = arith.constant 0 : index
      %c0_27 = arith.constant 0 : index
      %c0_28 = arith.constant 0 : index
      %c0_29 = arith.constant 0 : index
      %62 = vector.load %arg5[%c0_26, %c0_27, %c0_28, %c0_29] : memref<1x1x5x4xf32, #tpu.memory_space<vmem>>, vector<1x1x5x4xf32>
      tpu.vector_store %arg5[%c0_26, %c0_27, %c0_28, %c0_29], %61 {strides = array<i32>} : memref<1x1x5x4xf32, #tpu.memory_space<vmem>>, vector<1x1x5x4xf32>,
    } else {
    }
    %c0 = arith.constant 0 : index
    %c0_1 = arith.constant 0 : index
    %c0_2 = arith.constant 0 : index
    %3 = vector.load %arg3[%c0, %c0_1, %c0_2] : memref<1x4x128xf32, #tpu.memory_space<vmem>>, vector<1x4x128xf32>
    %4 = vector.shape_cast %3 : vector<1x4x128xf32> to vector<4x128xf32>
    %c0_3 = arith.constant 0 : index
    %c0_4 = arith.constant 0 : index
    %c0_5 = arith.constant 0 : index
    %5 = vector.load %arg4[%c0_3, %c0_4, %c0_5] : memref<1x1x128xi32, #tpu.memory_space<vmem>>, vector<1x1x128xi32>
    %6 = vector.shape_cast %5 : vector<1x1x128xi32> to vector<1x128xi32>
    %c0_i32_6 = arith.constant 0 : i32
    %7 = vector.broadcast %c0_i32_6 : i32 to vector<1x128xi32>
    %8 = arith.cmpi sge, %6, %7 : vector<1x128xi32>
    %9 = arith.extui %8 : vector<1x128xi1> to vector<1x128xi32>
    %10 = arith.sitofp %9 : vector<1x128xi32> to vector<1x128xf32>
    %11 = tpu.iota {dimensions = array<i32: 0>} : vector<4x128xi32>
    %12 = vector.broadcast %6 : vector<1x128xi32> to vector<4x128xi32>
    %13 = arith.cmpi eq, %11, %12 : vector<4x128xi32>
    %14 = arith.extui %13 : vector<4x128xi1> to vector<4x128xi32>
    %15 = arith.sitofp %14 : vector<4x128xi32> to vector<4x128xf32>
    %cst = arith.constant dense<0xFF800000> : vector<128xf32>
    %16 = vector.multi_reduction <maximumf>, %4, %cst [0] : vector<4x128xf32> to vector<128xf32>
    %17 = vector.shape_cast %16 : vector<128xf32> to vector<1x128xf32>
    %18 = vector.broadcast %17 : vector<1x128xf32> to vector<4x128xf32>
    %19 = arith.subf %4, %18 : vector<4x128xf32>
    %20 = math.exp %19 : vector<4x128xf32>
    %cst_7 = arith.constant dense<0.000000e+00> : vector<128xf32>
    %21 = vector.multi_reduction <add>, %20, %cst_7 [0] : vector<4x128xf32> to vector<128xf32>
    %22 = vector.shape_cast %21 : vector<128xf32> to vector<1x128xf32>
    %23 = arith.divf %10, %22 : vector<1x128xf32>
    %24 = vector.broadcast %23 : vector<1x128xf32> to vector<4x128xf32>
    %25 = arith.mulf %20, %24 : vector<4x128xf32>
    %cst_8 = arith.constant 0.000000e+00 : f32
    %26 = vector.broadcast %cst_8 : f32 to vector<4x128xf32>
    %27 = arith.maximumf %4, %26 : vector<4x128xf32>
    %28 = arith.mulf %4, %15 : vector<4x128xf32>
    %29 = arith.subf %27, %28 : vector<4x128xf32>
    %30 = math.absf %4 : vector<4x128xf32>
    %cst_9 = arith.constant 0.000000e+00 : f32
    %31 = vector.broadcast %cst_9 : f32 to vector<4x128xf32>
    %32 = arith.subf %31, %30 : vector<4x128xf32>
    %33 = math.exp %32 : vector<4x128xf32>
    %34 = math.log1p %33 : vector<4x128xf32>
    %35 = arith.addf %29, %34 : vector<4x128xf32>
    %cst_10 = arith.constant 0.000000e+00 : f32
    %36 = vector.broadcast %cst_10 : f32 to vector<4x128xf32>
    %37 = arith.subf %36, %35 : vector<4x128xf32>
    %38 = math.exp %37 : vector<4x128xf32>
    %cst_11 = arith.constant 1.000000e+00 : f32
    %39 = vector.broadcast %cst_11 : f32 to vector<4x128xf32>
    %40 = arith.subf %39, %38 : vector<4x128xf32>
    %41 = arith.mulf %40, %40 : vector<4x128xf32>
    %42 = vector.broadcast %10 : vector<1x128xf32> to vector<4x128xf32>
    %43 = arith.mulf %41, %42 : vector<4x128xf32>
    %44 = arith.mulf %43, %35 : vector<4x128xf32>
    %cst_12 = arith.constant dense<0.000000e+00> : vector<4xf32>
    %45 = vector.multi_reduction <add>, %44, %cst_12 [1] : vector<4x128xf32> to vector<4xf32>
    %cst_13 = arith.constant dense<0.000000e+00> : vector<4xf32>
    %46 = vector.multi_reduction <add>, %43, %cst_13 [1] : vector<4x128xf32> to vector<4xf32>
    %47 = arith.mulf %25, %15 : vector<4x128xf32>
    %cst_14 = arith.constant dense<0.000000e+00> : vector<4xf32>
    %48 = vector.multi_reduction <add>, %47, %cst_14 [1] : vector<4x128xf32> to vector<4xf32>
    %cst_15 = arith.constant dense<0.000000e+00> : vector<4xf32>
    %49 = vector.multi_reduction <add>, %25, %cst_15 [1] : vector<4x128xf32> to vector<4xf32>
    %cst_16 = arith.constant dense<0.000000e+00> : vector<4xf32>
    %50 = vector.multi_reduction <add>, %15, %cst_16 [1] : vector<4x128xf32> to vector<4xf32>
    %51 = vector.shape_cast %45 : vector<4xf32> to vector<1x4xf32>
    %52 = vector.shape_cast %46 : vector<4xf32> to vector<1x4xf32>
    %53 = vector.shape_cast %48 : vector<4xf32> to vector<1x4xf32>
    %54 = vector.shape_cast %49 : vector<4xf32> to vector<1x4xf32>
    %55 = vector.shape_cast %50 : vector<4xf32> to vector<1x4xf32>
    %56 = tpu.concatenate %51, %52, %53, %54, %55 in 0 : vector<1x4xf32>, vector<1x4xf32>, vector<1x4xf32>, vector<1x4xf32>, vector<1x4xf32> -> vector<5x4xf32>
    %c0_17 = arith.constant 0 : index
    %c0_18 = arith.constant 0 : index
    %c0_19 = arith.constant 0 : index
    %c0_20 = arith.constant 0 : index
    %57 = vector.load %arg5[%c0_17, %c0_18, %c0_19, %c0_20] : memref<1x1x5x4xf32, #tpu.memory_space<vmem>>, vector<1x1x5x4xf32>
    %58 = vector.shape_cast %56 : vector<5x4xf32> to vector<1x1x5x4xf32>
    %59 = arith.addf %57, %58 : vector<1x1x5x4xf32>
    %c0_21 = arith.constant 0 : index
    %c0_22 = arith.constant 0 : index
    %c0_23 = arith.constant 0 : index
    %c0_24 = arith.constant 0 : index
    %60 = vector.load %arg5[%c0_21, %c0_22, %c0_23, %c0_24] : memref<1x1x5x4xf32, #tpu.memory_space<vmem>>, vector<1x1x5x4xf32>
    tpu.vector_store %arg5[%c0_21, %c0_22, %c0_23, %c0_24], %59 {strides = array<i32>} : memref<1x1x5x4xf32, #tpu.memory_space<vmem>>, vector<1x1x5x4xf32>,
    return
  }
  func.func @transform_0(%arg0: i32, %arg1: i32, %arg2: i32) -> (i32, i32, i32) {
    %c1_i32 = arith.constant 1 : i32
    %0 = arith.muli %arg1, %c1_i32 : i32
    %1 = arith.addi %0, %arg2 : i32
    %c0_i32 = arith.constant 0 : i32
    %c0_i32_0 = arith.constant 0 : i32
    return %arg0, %c0_i32, %1 : i32, i32, i32
  }
  func.func @transform_1(%arg0: i32, %arg1: i32, %arg2: i32) -> (i32, i32, i32) {
    %c1_i32 = arith.constant 1 : i32
    %0 = arith.muli %arg1, %c1_i32 : i32
    %1 = arith.addi %0, %arg2 : i32
    %c0_i32 = arith.constant 0 : i32
    %c0_i32_0 = arith.constant 0 : i32
    return %arg0, %c0_i32, %1 : i32, i32, i32
  }
  func.func @transform_2(%arg0: i32, %arg1: i32, %arg2: i32) -> (i32, i32, i32, i32) {
    %c0_i32 = arith.constant 0 : i32
    %c0_i32_0 = arith.constant 0 : i32
    %c0_i32_1 = arith.constant 0 : i32
    return %arg0, %arg1, %c0_i32, %c0_i32_0 : i32, i32, i32, i32
  }
}

</mosaic_0001>

<llo_original>
// kernel: focal_jaccard_loss.1
$region0: #{focal_jaccard_loss.1}
  #allocation0 [shape = 'u32[]', space=smem, size = 0x4, offset = 0x4, fixed_abs, tag = 'smem constant byte address 0x4 - core index']
  #allocation1 [shape = 'u32[144,128]{1,0:T(1,128)}', space=vmem, size = 0x12000, scoped, tag = 'internal scratch']
  %s0 = inlined_call_operand.vmem [shape: f32[2,4,256], index: 0, kind: input, shape index: {}]
  %s1 = inlined_call_operand.vmem [shape: s32[2,1,256], index: 1, kind: input, shape index: {}]
  %s2 = inlined_call_operand.vmem [shape: f32[2,2,5,4], index: 2, kind: output, shape index: {}]
  %s3 = sld [smem:[#allocation0]]
  $region45: #{focal_jaccard_loss.1} parent=0
    _
  %s5 = ssub.s32 1, %s3
  %s6 = scalar_select 0, %s5, %s3
  loop: start=0, step=1, limit=6
  $region2: #{focal_jaccard_loss.1} parent=0 // loop_pre_header
    _
  $region3: #{focal_jaccard_loss.1} parent=0 // loop_header
    %s8 = sphi 0, %s12
    %p9 = scmp.ge.s32.totalorder %s8, 6
    %s15 = sphi 0, %s34
    %s16 = sphi 0, %s30
    %s17 = sphi 0, %s26
    %s18 = sphi 0, %s15
    %s19 = sphi 0, %s16
    %s20 = sphi 0, %s17
    %s21 = sphi 0, %s18
    %s22 = sphi 0, %s19
    %s23 = sphi 0, %s20
    %s41 = sphi 0, %s43
    %s44 = sphi 0, %s41
    %s45 = sphi 0, %s44
    %s61 = sphi 0, %s45
    %s71 = sphi 0, %s73
    %s74 = sphi 0, %s71
    %s75 = sphi 0, %s74
    %s91 = sphi 0, %s75
    %s99 = sphi 0, %s101
    %s102 = sphi 0, %s99
    %s103 = sphi 0, %s102
    %s119 = sphi 0, %s103
  $region4: #{focal_jaccard_loss.1} parent=0 // loop_header_branch
    %11 = sbr.rel (%p9) target = $region8
  $region5: #{focal_jaccard_loss.1} parent=0 // loop_body
    %s13 = ssub.s32 %s8, 1
    %s14 = ssub.s32 %s8, 2
    %s24 = sadd.s32 1, %s17
    %p25 = scmp.ge.s32.totalorder %s24, 1
    %s26 = scalar_select %p25, 0, %s24
    %s27 = sadd.s32 1, %s16
    %s28 = scalar_select %p25, %s27, %s16
    %p29 = scmp.ge.s32.totalorder %s28, 2
    %s30 = scalar_select %p29, 0, %s28
    %s31 = sadd.s32 1, %s15
    %s32 = scalar_select %p29, %s31, %s15
    %p33 = scmp.ge.s32.totalorder %s32, 2
    %s34 = scalar_select %p33, 0, %s32
    %s35 = sadd.s32 %s16, %s17
    %s36 = sadd.s32 %s30, %s26
    %s37 = ssub.s32 %s15, %s34
    %s38 = ssub.s32 %s35, %s36
    %s39 = sor.u32 %s37, %s38
    %p40 = scmp.eq.s32.totalorder %s39, 0
    %s42 = sadd.s32 %s41, 1
    %s43 = scalar_select %p40, %s41, %s42
    %p46 = pneg %p40
    %p47 = scmp.eq.s32.totalorder %s8, 3
    %p48 = por %p46, %p47
    %p49 = scmp.ne.s32.totalorder %s41, %s44
    %p50 = scmp.eq.s32.totalorder %s8, 0
    %p51 = por %p49, %p50
    %p52 = scmp.ne.s32.totalorder %s41, %s44
    %p53 = scmp.eq.s32.totalorder %s13, 3
    %p54 = por %p52, %p53
    %p55 = scmp.ne.s32.totalorder %s44, %s45
    %p56 = scmp.eq.s32.totalorder %s13, 0
    %p57 = por %p55, %p56
    %p58 = scmp.ne.s32.totalorder %s44, %s45
    %p59 = scmp.eq.s32.totalorder %s14, 3
    %p60 = por %p58, %p59
    %p62 = scmp.ne.s32.totalorder %s45, %s61
    %p63 = scmp.eq.s32.totalorder %s14, 0
    %p64 = por %p62, %p63
    %s65 = sadd.s32 %s16, %s17
    %s66 = sadd.s32 %s30, %s26
    %s67 = ssub.s32 %s15, %s34
    %s68 = ssub.s32 %s65, %s66
    %s69 = sor.u32 %s67, %s68
    %p70 = scmp.eq.s32.totalorder %s69, 0
    %s72 = sadd.s32 %s71, 1
    %s73 = scalar_select %p70, %s71, %s72
    %p76 = pneg %p70
    %p77 = scmp.eq.s32.totalorder %s8, 3
    %p78 = por %p76, %p77
    %p79 = scmp.ne.s32.totalorder %s71, %s74
    %p80 = scmp.eq.s32.totalorder %s8, 0
    %p81 = por %p79, %p80
    %p82 = scmp.ne.s32.totalorder %s71, %s74
    %p83 = scmp.eq.s32.totalorder %s13, 3
    %p84 = por %p82, %p83
    %p85 = scmp.ne.s32.totalorder %s74, %s75
    %p86 = scmp.eq.s32.totalorder %s13, 0
    %p87 = por %p85, %p86
    %p88 = scmp.ne.s32.totalorder %s74, %s75
    %p89 = scmp.eq.s32.totalorder %s14, 3
    %p90 = por %p88, %p89
    %p92 = scmp.ne.s32.totalorder %s75, %s91
    %p93 = scmp.eq.s32.totalorder %s14, 0
    %p94 = por %p92, %p93
    %s95 = ssub.s32 %s15, %s34
    %s96 = ssub.s32 %s16, %s30
    %s97 = sor.u32 %s95, %s96
    %p98 = scmp.eq.s32.totalorder %s97, 0
    %s100 = sadd.s32 %s99, 1
    %s101 = scalar_select %p98, %s99, %s100
    %p104 = pneg %p98
    %p105 = scmp.eq.s32.totalorder %s8, 3
    %p106 = por %p104, %p105
    %p107 = scmp.ne.s32.totalorder %s99, %s102
    %p108 = scmp.eq.s32.totalorder %s8, 0
    %p109 = por %p107, %p108
    %p110 = scmp.ne.s32.totalorder %s99, %s102
    %p111 = scmp.eq.s32.totalorder %s13, 3
    %p112 = por %p110, %p111
    %p113 = scmp.ne.s32.totalorder %s102, %s103
    %p114 = scmp.eq.s32.totalorder %s13, 0
    %p115 = por %p113, %p114
    %p116 = scmp.ne.s32.totalorder %s102, %s103
    %p117 = scmp.eq.s32.totalorder %s14, 3
    %p118 = por %p116, %p117
    %p120 = scmp.ne.s32.totalorder %s103, %s119
    %p121 = scmp.eq.s32.totalorder %s14, 0
    %p122 = por %p120, %p121
    %p123 = scmp.le.s32.totalorder 1, %s8
    %p124 = scmp.lt.s32.totalorder %s8, 5
    %p125 = pnand %p123, %p124
    %p126 = pneg %p125
    // Predicated region
    $region9: #{focal_jaccard_loss.1} parent=5 // pred_check
      _
    $region10: #{focal_jaccard_loss.1} parent=5 // pred_check_branch
      %128 = sbr.rel (%p125) target = $region12
    $region11: #{focal_jaccard_loss.1} parent=5 // pred_region
      %s129 = ssub.s32 %s8, 1
    $region12: #{focal_jaccard_loss.1} parent=5 // pred_fallthru
      _
    %p130 = scmp.lt.s32.totalorder %s8, 4
    // Predicated region
    $region13: #{focal_jaccard_loss.1} parent=5 // pred_check
      %p131 = pneg %p130
    $region14: #{focal_jaccard_loss.1} parent=5 // pred_check_branch
      %133 = sbr.rel (%p131) target = $region16
    $region15: #{focal_jaccard_loss.1} parent=5 // pred_region
      // Predicated region
      $region17: #{focal_jaccard_loss.1} parent=15 // pred_check
        %p134 = pneg %p51
      $region18: #{focal_jaccard_loss.1} parent=15 // pred_check_branch
        %136 = sbr.rel (%p134) target = $region20
      $region19: #{focal_jaccard_loss.1} parent=15 // pred_region
        %s137 = sadd.s32 %s16, %s17
        %p138 = scmp.lt.s32.totalorder %s15, 1
        %s139 = scalar_select %p138, %s15, 1
        %p140 = scmp.lt.s32.totalorder %s137, 1
        %s141 = scalar_select %p140, %s137, 1
        %s142 = smul.addr %s139, 2
        %s143 = sadd.s32 %s141, %s142
        %s144 = smul.addr %s143, 4
        %s145 = scalar_lea.vmem %s0, %s144
        %s146 = sadd.s32 %s16, %s17
      $region20: #{focal_jaccard_loss.1} parent=15 // pred_fallthru
        _
      // Predicated region
      $region21: #{focal_jaccard_loss.1} parent=15 // pred_check
        %p147 = pneg %p81
      $region22: #{focal_jaccard_loss.1} parent=15 // pred_check_branch
        %149 = sbr.rel (%p147) target = $region24
      $region23: #{focal_jaccard_loss.1} parent=15 // pred_region
        %s150 = sadd.s32 %s16, %s17
        %p151 = scmp.lt.s32.totalorder %s15, 1
        %s152 = scalar_select %p151, %s15, 1
        %p153 = scmp.lt.s32.totalorder %s150, 1
        %s154 = scalar_select %p153, %s150, 1
        %s155 = smul.addr %s152, 2
        %s156 = sadd.s32 %s154, %s155
        %s157 = scalar_lea.vmem %s1, %s156
        %s158 = sadd.s32 %s16, %s17
      $region24: #{focal_jaccard_loss.1} parent=15 // pred_fallthru
        _
    $region16: #{focal_jaccard_loss.1} parent=5 // pred_fallthru
      _
    %p159 = scmp.le.s32.totalorder 1, %s8
    %p160 = scmp.lt.s32.totalorder %s8, 5
    %p161 = pnand %p159, %p160
    %p162 = pneg %p161
    // Predicated region
    $region25: #{focal_jaccard_loss.1} parent=5 // pred_check
      _
    $region26: #{focal_jaccard_loss.1} parent=5 // pred_check_branch
      %164 = sbr.rel (%p161) target = $region28
    $region27: #{focal_jaccard_loss.1} parent=5 // pred_region
      %s165 = ssub.s32 %s8, 1
      %s166 = sadd.s32 %s19, %s20
      %p167 = scmp.lt.s32.totalorder %s18, 1
      %s168 = scalar_select %p167, %s18, 1
      %p169 = scmp.lt.s32.totalorder %s166, 1
      %s170 = scalar_select %p169, %s166, 1
      %s171 = smul.addr %s168, 2
      %s172 = sadd.s32 %s170, %s171
      %s173 = smul.addr %s172, 4
      %s174 = scalar_lea.vmem %s0, %s173
      %p175 = pneg %p57
      %p176 = pneg %p54
      %s177 = sadd.s32 %s19, %s20
      %p178 = scmp.lt.s32.totalorder %s18, 1
      %s179 = scalar_select %p178, %s18, 1
      %p180 = scmp.lt.s32.totalorder %s177, 1
      %s181 = scalar_select %p180, %s177, 1
      %s182 = smul.addr %s179, 2
      %s183 = sadd.s32 %s181, %s182
      %s184 = scalar_lea.vmem %s1, %s183
      %p185 = pneg %p87
      %p186 = pneg %p84
      %p187 = pneg %p115
      %p188 = pneg %p112
      %p189 = scmp.lt.s32.totalorder %s18, 1
      %s190 = scalar_select %p189, %s18, 1
      %p191 = scmp.lt.s32.totalorder %s19, 1
      %s192 = scalar_select %p191, %s19, 1
      %s193 = smul.addr %s190, 2
      %s194 = sadd.s32 %s192, %s193
      %s195 = smul.addr %s194, 8
      %s196 = scalar_lea.vmem %s2, %s195
      %s197 = sadd.s32 %s19, %s20
      %p198 = scmp.lt.s32.totalorder %s18, 1
      %s199 = scalar_select %p198, %s18, 1
      %p200 = scmp.lt.s32.totalorder %s197, 1
      %s201 = scalar_select %p200, %s197, 1
      %s202 = smul.addr %s199, 2
      %s203 = sadd.s32 %s201, %s202
      %s204 = smul.addr %s203, 4
      %s205 = scalar_lea.vmem %s0, %s204
      %s206 = sadd.s32 %s19, %s20
      %s207 = sadd.s32 %s19, %s20
      %p208 = scmp.lt.s32.totalorder %s18, 1
      %s209 = scalar_select %p208, %s18, 1
      %p210 = scmp.lt.s32.totalorder %s207, 1
      %s211 = scalar_select %p210, %s207, 1
      %s212 = smul.addr %s209, 2
      %s213 = sadd.s32 %s211, %s212
      %s214 = scalar_lea.vmem %s1, %s213
      %s215 = sadd.s32 %s19, %s20
      %p216 = scmp.lt.s32.totalorder %s18, 1
      %s217 = scalar_select %p216, %s18, 1
      %p218 = scmp.lt.s32.totalorder %s19, 1
      %s219 = scalar_select %p218, %s19, 1
      %s220 = smul.addr %s217, 2
      %s221 = sadd.s32 %s219, %s220
      %s222 = smul.addr %s221, 8
      %s223 = scalar_lea.vmem %s2, %s222
      %p224 = scmp.eq.s32.totalorder %s20, 0
      // Predicated region
      $region29: #{focal_jaccard_loss.1} parent=27 // pred_check
        %p225 = pneg %p224
      $region30: #{focal_jaccard_loss.1} parent=27 // pred_check_branch
        %227 = sbr.rel (%p225) target = $region32
      $region31: #{focal_jaccard_loss.1} parent=27 // pred_region
        %vm228 = vcmask 28672
        %229 = vst.msk [vmem:[%s223] sm:$0x1f] %vm228, 0.0
      $region32: #{focal_jaccard_loss.1} parent=27 // pred_fallthru
        _
      %v230 = vld [vmem:[%s205] sm:$0xf]
      %v231 = vld [vmem:[%s214] sm:$0x1]
      %vm232 = vcmp.ge.s32.totalorder %v231, 0
      %v233 = vsel %vm232, 1, 0
      %v234 = vcvt.s32.f32 %v233
      %v235 = vlaneseq
      %v236 = vshrl.u32 %v235, 7
      %v237 = vlaneseq
      %v238 = vshrl.u32 %v237, 7
      %v239 = vsub.s32 0, %v238
      %v240 = vrot.slane %v231, %v239
      %vm241 = vcmp.eq.s32.totalorder %v236, %v240
      %v242 = vsel %vm241, 1, 0
      %v243 = vcvt.s32.f32 %v242
      %vm244 = vcmask 1043456
      %v245 = vsel %vm244, %v230, -inf
      %v246 = vrot.slane %v245, 4
      %v247 = vmax.f32 %v245, %v246
      %v248 = vrot.slane %v247, 2
      %v249 = vmax.f32 %v247, %v248
      %v250 = vrot.slane %v249, 1
      %v251 = vmax.f32 %v249, %v250
      %v252 = vsub.f32 %v230, %v251
      %v253 = vmul.f32 %v252, 1.442695
      %v254 = vpow.pop %v253
      %v255 = vsel %vm244, %v254, 0.0
      %v256 = vrot.slane %v255, 4
      %v257 = vadd.f32 %v255, %v256
      %v258 = vrot.slane %v257, 2
      %v259 = vadd.f32 %v257, %v258
      %v260 = vrot.slane %v259, 1
      %v261 = vadd.f32 %v259, %v260
      %v262 = vrcp.pop %v261
      %v263 = vmul.f32 %v234, %v262
      %v265 = vlaneseq
      %v266 = vshrl.u32 %v265, 7
      %v267 = vsub.s32 0, %v266
      %v268 = vrot.slane %v263, %v267
      %v270 = vmul.f32 %v254, %v268
      %v271 = vmax.f32 %v230, 0.0
      %v272 = vmul.f32 %v230, %v243
      %v273 = vsub.f32 %v271, %v272
      %v274 = vand.u32 2147483647, %v230
      %v275 = vsub.f32 0.0, %v274
      %v276 = vmul.f32 %v275, 1.442695
      %v277 = vpow.pop %v276
      %v278 = vadd.f32 %v277, 1.0
      %v279 = vlog2.pop %v278
      %v280 = vmul.f32 %v279, 0.6931472
      %v281 = vmul.f32 -0.5, %v277
      %v282 = vadd.f32 %v281, 1.0
      %v283 = vmul.f32 %v282, %v277
      %v284 = vand.u32 2147483647, %v277
      %vm285 = vcmp.lt.f32.partialorder %v284, 0.0004427343
      %v286 = vsel %vm285, %v283, %v280
      %v287 = vadd.f32 %v273, %v286
      %v288 = vsub.f32 0.0, %v287
      %v289 = vmul.f32 %v288, 1.442695
      %v290 = vpow.pop %v289
      %v291 = vsub.f32 1.0, %v290
      %v292 = vmul.f32 %v291, %v291
      %v294 = vlaneseq
      %v295 = vshrl.u32 %v294, 7
      %v296 = vsub.s32 0, %v295
      %v297 = vrot.slane %v234, %v296
      %v299 = vmul.f32 %v292, %v297
      %v300 = vmul.f32 %v299, %v287
      %v301 = vsel %vm244, %v300, 0.0
      %302 = vadd.xlane.f32.xlu0 %v301
      %v303 = vpop.xlane.xlu0 %302
      %v304 = vsel %vm244, %v299, 0.0
      %305 = vadd.xlane.f32.xlu0 %v304
      %v306 = vpop.xlane.xlu0 %305
      %v307 = vmul.f32 %v270, %v243
      %v308 = vsel %vm244, %v307, 0.0
      %309 = vadd.xlane.f32.xlu0 %v308
      %v310 = vpop.xlane.xlu0 %309
      %v311 = vsel %vm244, %v270, 0.0
      %312 = vadd.xlane.f32.xlu0 %v311
      %v313 = vpop.xlane.xlu0 %312
      %v314 = vsel %vm244, %v243, 0.0
      %315 = vadd.xlane.f32.xlu0 %v314
      %v316 = vpop.xlane.xlu0 %315
      %v318 = vlaneseq
      %v319 = vand.u32 %v318, 127
      %v320 = vlaneseq
      %v321 = vshrl.u32 %v320, 7
      %v322 = vsub.s32 %v319, %v321
      %v323 = vrot.slane %v303, %v322
      %v326 = vlaneseq
      %v327 = vshrl.u32 %v326, 7
      %v328 = vsub.s32 %v319, %v327
      %v329 = vrot.slane %v306, %v328
      %v332 = vlaneseq
      %v333 = vshrl.u32 %v332, 7
      %v334 = vsub.s32 %v319, %v333
      %v335 = vrot.slane %v310, %v334
      %v338 = vlaneseq
      %v339 = vshrl.u32 %v338, 7
      %v340 = vsub.s32 %v319, %v339
      %v341 = vrot.slane %v313, %v340
      %v344 = vlaneseq
      %v345 = vshrl.u32 %v344, 7
      %v346 = vsub.s32 %v319, %v345
      %v347 = vrot.slane %v316, %v346
      %vm349 = vcmask 1040384
      %v350 = vsel %vm349, %v323, %v329
      %vm351 = vcmask 1041408
      %v352 = vsel %vm351, %v350, %v335
      %vm353 = vcmask 1042432
      %v354 = vsel %vm353, %v352, %v341
      %v355 = vsel %vm244, %v354, %v347
      %v356 = vld [vmem:[%s223] sm:$0x1f]
      %v357 = vadd.f32 %v356, %v355
      %vm358 = vcmask 28672
      %359 = vst.msk [vmem:[%s223] sm:$0x1f] %vm358, %v357
      %p360 = scmp.lt.s32.totalorder %s18, 1
      %s361 = scalar_select %p360, %s18, 1
      %p362 = scmp.lt.s32.totalorder %s19, 1
      %s363 = scalar_select %p362, %s19, 1
      %s364 = smul.addr %s361, 2
      %s365 = sadd.s32 %s363, %s364
      %s366 = smul.addr %s365, 8
      %s367 = scalar_lea.vmem %s2, %s366
      // Predicated region
      $region33: #{focal_jaccard_loss.1} parent=27 // pred_check
        %p368 = pneg %p112
      $region34: #{focal_jaccard_loss.1} parent=27 // pred_check_branch
        %370 = sbr.rel (%p368) target = $region36
      $region35: #{focal_jaccard_loss.1} parent=27 // pred_region
        _
      $region36: #{focal_jaccard_loss.1} parent=27 // pred_fallthru
        _
    $region28: #{focal_jaccard_loss.1} parent=5 // pred_fallthru
      _
    %p371 = scmp.le.s32.totalorder 2, %s8
    // Predicated region
    $region37: #{focal_jaccard_loss.1} parent=5 // pred_check
      %p372 = pneg %p371
    $region38: #{focal_jaccard_loss.1} parent=5 // pred_check_branch
      %374 = sbr.rel (%p372) target = $region40
    $region39: #{focal_jaccard_loss.1} parent=5 // pred_region
      %s375 = ssub.s32 %s8, 2
      // Predicated region
      $region41: #{focal_jaccard_loss.1} parent=39 // pred_check
        %p376 = pneg %p118
      $region42: #{focal_jaccard_loss.1} parent=39 // pred_check_branch
        %378 = sbr.rel (%p376) target = $region44
      $region43: #{focal_jaccard_loss.1} parent=39 // pred_region
        %p379 = scmp.lt.s32.totalorder %s21, 1
        %s380 = scalar_select %p379, %s21, 1
        %p381 = scmp.lt.s32.totalorder %s22, 1
        %s382 = scalar_select %p381, %s22, 1
        %s383 = smul.addr %s380, 2
        %s384 = sadd.s32 %s382, %s383
        %s385 = smul.addr %s384, 8
        %s386 = scalar_lea.vmem %s2, %s385
      $region44: #{focal_jaccard_loss.1} parent=39 // pred_fallthru
        _
    $region40: #{focal_jaccard_loss.1} parent=5 // pred_fallthru
      _
  $region6: #{focal_jaccard_loss.1} parent=0 // loop_footer
    %s12 = sadd.s32 1, %s8
  $region7: #{focal_jaccard_loss.1} parent=0 // loop_footer_branch
    %7 = sbr.rel target = $region3
  $region8: #{focal_jaccard_loss.1} parent=0 // loop_exit
    _

</llo_original>
